<compile_context>
chip_gen: v7x
topology: tpu7x:2x2x1
jax: 0.10.0
libtpu: 0.0.40
codegen_flags: <defaults>
</compile_context>

<pallas_src>
import functools

import jax
import jax.numpy as jnp
from jax.experimental import pallas as pl
from jax.experimental.pallas import tpu as pltpu


def _round_up(x, m):
    return ((x + m - 1) // m) * m


def _log_sigmoid(x):
    # numerically stable log(sigmoid(x)) = min(x, 0) - log1p(exp(-|x|))
    return jnp.minimum(x, 0.0) - jnp.log1p(jnp.exp(-jnp.abs(x)))


def _choose_tile(B, tb):
    Bp8 = _round_up(max(B, 1), 8)
    tb = max(8, min(_round_up(tb, 8), Bp8))
    # Keep >= 2 grid steps when possible so v7x's two TensorCores both get work.
    if Bp8 > 8 and pl.cdiv(Bp8, tb) < 2:
        tb = _round_up(pl.cdiv(Bp8, 2), 8)
    num_tiles = pl.cdiv(Bp8, tb)
    return tb, num_tiles, num_tiles * tb


def _skipgram_tile_kernel(u_pos_ref, v_pos_ref, v_neg_ref, u_tab_ref, v_tab_ref,
                          out_ref, *, total_rows):
    tb = u_pos_ref.shape[0]
    V = u_tab_ref.shape[0]
    N = v_neg_ref.shape[1]

    u_idx = u_pos_ref[...]                                   # (tb, 1) int32
    v_idx = v_pos_ref[...]                                   # (tb, 1) int32
    n_idx = v_neg_ref[...]                                   # (tb, N) int32

    vocab = jax.lax.broadcasted_iota(jnp.int32, (tb, V), 1)  # (tb, V)

    onehot_u = (u_idx == vocab).astype(jnp.float32)          # (tb, V)
    onehot_v = (v_idx == vocab).astype(jnp.float32)          # (tb, V)

    # counts[b, w] = #{n : v_neg[b, n] == w}.  Gather + sum over N is linear,
    # so sum_n v_weight[v_neg[b, n]] == counts[b] @ v_weight  (exact).
    counts = (n_idx[:, 0:1] == vocab).astype(jnp.float32)
    for n in range(1, N):                                    # N is small & static
        counts = counts + (n_idx[:, n:n + 1] == vocab).astype(jnp.float32)

    u_tab = u_tab_ref[...]                                   # (V, D) VMEM-resident
    v_tab = v_tab_ref[...]                                   # (V, D) VMEM-resident

    u = jnp.dot(onehot_u, u_tab, preferred_element_type=jnp.float32)      # (tb, D)
    v = jnp.dot(onehot_v, v_tab, preferred_element_type=jnp.float32)      # (tb, D)
    neg_sum = jnp.dot(counts, v_tab, preferred_element_type=jnp.float32)  # (tb, D)

    pos_score = jnp.sum(u * v, axis=1, keepdims=True)        # (tb, 1)
    neg_score = jnp.sum(neg_sum * u, axis=1, keepdims=True)  # (tb, 1)

    row_loss = _log_sigmoid(pos_score) + _log_sigmoid(-neg_score)  # (tb, 1)

    # Padded rows gather real embedding rows (index 0) and would contribute a
    # non-zero loss, so mask them out before the tile reduction.
    row_id = (pl.program_id(0) * tb
              + jax.lax.broadcasted_iota(jnp.int32, (tb, 1), 0))
    row_loss = jnp.where(row_id < total_rows, row_loss, 0.0)

    tile_sum = jnp.sum(row_loss)                             # scalar

    # Lane-dense (8, 128) output block: tile_sum at [0, 0], zeros elsewhere, so
    # the wrapper can jnp.sum the whole output.  Single unmasked vreg store.
    r = jax.lax.broadcasted_iota(jnp.int32, (8, 128), 0)
    c = jax.lax.broadcasted_iota(jnp.int32, (8, 128), 1)
    out_ref[...] = jnp.where((r == 0) & (c == 0), tile_sum, 0.0)


def skipgram_forward(u_weight, v_weight, u_pos, v_pos, v_neg, batch_size, *, tb=1024):
    V, D = u_weight.shape
    B = u_pos.shape[0]
    N = v_neg.shape[1]

    # One-hot MXU gather path: requires the full tables VMEM-resident and a
    # modest in-kernel (tb, V) one-hot working set.
    assert V * D * 4 <= 8 * 1024 * 1024, (
        "vocab table too large for the VMEM-resident gather path; "
        "TODO(synk): HBM table + manual make_async_copy row gather")
    max_tb_for_vocab = max(8, (4 * 1024 * 1024) // (4 * V))
    tb = min(tb, max_tb_for_vocab)

    tb, num_tiles, Bp = _choose_tile(B, tb)

    u_pos = u_pos.astype(jnp.int32).reshape(B, 1)
    v_pos = v_pos.astype(jnp.int32).reshape(B, 1)
    v_neg = v_neg.astype(jnp.int32).reshape(B, N)
    if Bp != B:
        pad = Bp - B
        u_pos = jnp.pad(u_pos, ((0, pad), (0, 0)))
        v_pos = jnp.pad(v_pos, ((0, pad), (0, 0)))
        v_neg = jnp.pad(v_neg, ((0, pad), (0, 0)))

    u_weight = u_weight.astype(jnp.float32)
    v_weight = v_weight.astype(jnp.float32)

    kernel = functools.partial(_skipgram_tile_kernel, total_rows=B)

    tile_sums = pl.pallas_call(
        kernel,
        out_shape=jax.ShapeDtypeStruct((num_tiles * 8, 128), jnp.float32),
        grid_spec=pltpu.PrefetchScalarGridSpec(
            num_scalar_prefetch=0,
            grid=(num_tiles,),
            in_specs=[
                pl.BlockSpec((tb, 1), lambda i: (i, 0)),   # u_pos indices
                pl.BlockSpec((tb, 1), lambda i: (i, 0)),   # v_pos indices
                pl.BlockSpec((tb, N), lambda i: (i, 0)),   # v_neg indices
                pl.BlockSpec((V, D), lambda i: (0, 0)),    # u table (resident)
                pl.BlockSpec((V, D), lambda i: (0, 0)),    # v table (resident)
            ],
            out_specs=pl.BlockSpec((8, 128), lambda i: (i, 0)),
        ),
        compiler_params=pltpu.CompilerParams(
            dimension_semantics=("parallel",),             # independent tiles
            vmem_limit_bytes=32 * 1024 * 1024,
        ),
    )(u_pos, v_pos, v_neg, u_weight, v_weight)

    # Tiny final reduce + (-1 / batch_size) scale (batch_size is a Python int).
    return -jnp.sum(tile_sums) / batch_size


def skipgram_forward_ref(u_weight, v_weight, u_pos, v_pos, v_neg, batch_size):
    embed_u = u_weight[u_pos]
    embed_v = v_weight[v_pos]
    score = jnp.sum(embed_u * embed_v, axis=1)
    log_target = jax.nn.log_sigmoid(score)
    neg_embed_v = v_weight[v_neg]
    neg_score = jnp.einsum("bnd,bd->bn", neg_embed_v, embed_u)
    neg_score = jnp.sum(neg_score, axis=1)
    sum_log_sampled = jax.nn.log_sigmoid(-neg_score)
    loss = log_target + sum_log_sampled
    return -jnp.sum(loss) / batch_size


if __name__ == "__main__":
    vocab_size = 64
    embedding_dim = 128   # D (lane-aligned)
    B = 16                # batch
    N = 8                 # negative samples per positive

    key = jax.random.PRNGKey(0)
    k_u, k_v, k_up, k_vp, k_vn = jax.random.split(key, 5)

    initrange = 0.5 / embedding_dim
    # NOTE: the PyTorch init_emb() zeros v_embeddings; a small uniform init is
    # used here so the kernel computes something non-trivial (deterministic).
    u_weight = jax.random.uniform(
        k_u, (vocab_size, embedding_dim), jnp.float32, -initrange, initrange)
    v_weight = jax.random.uniform(
        k_v, (vocab_size, embedding_dim), jnp.float32, -initrange, initrange)

    u_pos = jax.random.randint(k_up, (B,), 0, vocab_size, dtype=jnp.int32)
    v_pos = jax.random.randint(k_vp, (B,), 0, vocab_size, dtype=jnp.int32)
    v_neg = jax.random.randint(k_vn, (B, N), 0, vocab_size, dtype=jnp.int32)

    loss = skipgram_forward(u_weight, v_weight, u_pos, v_pos, v_neg, B)
    loss = jax.block_until_ready(loss)

    loss_ref = skipgram_forward_ref(u_weight, v_weight, u_pos, v_pos, v_neg, B)
    assert jnp.allclose(loss, loss_ref, rtol=1e-5, atol=1e-5), (loss, loss_ref)

    print("KERNEL_OK")
</pallas_src>

<mosaic_0001>
module attributes {stable_mosaic.version = 11 : i64} {
  func.func @_skipgram_tile_kernel(%arg0: i32, %arg1: memref<8x1xi32, #tpu.memory_space<vmem>>, %arg2: memref<8x1xi32, #tpu.memory_space<vmem>>, %arg3: memref<8x8xi32, #tpu.memory_space<vmem>>, %arg4: memref<64x128xf32, #tpu.memory_space<vmem>>, %arg5: memref<64x128xf32, #tpu.memory_space<vmem>>, %arg6: memref<8x128xf32, #tpu.memory_space<vmem>>) attributes {dimension_semantics = [#tpu.dimension_semantics<parallel>], iteration_bounds = array<i64: 2>, scalar_prefetch = 0 : i64, scratch_operands = 0 : i64, tpu.core_type = #tpu.core_type<tc>, window_params = [{transform_indices = @transform_0, window_bounds = array<i64: 8, 1>}, {transform_indices = @transform_1, window_bounds = array<i64: 8, 1>}, {transform_indices = @transform_2, window_bounds = array<i64: 8, 8>}, {pipeline_mode = #tpu.pipeline_mode<synchronous>, transform_indices = @transform_3, window_bounds = array<i64: 64, 128>}, {pipeline_mode = #tpu.pipeline_mode<synchronous>, transform_indices = @transform_4, window_bounds = array<i64: 64, 128>}, {transform_indices = @transform_5, window_bounds = array<i64: 8, 128>}]} {
    %c0 = arith.constant 0 : index
    %c0_0 = arith.constant 0 : index
    %0 = vector.load %arg1[%c0, %c0_0] : memref<8x1xi32, #tpu.memory_space<vmem>>, vector<8x1xi32>
    %c0_1 = arith.constant 0 : index
    %c0_2 = arith.constant 0 : index
    %1 = vector.load %arg2[%c0_1, %c0_2] : memref<8x1xi32, #tpu.memory_space<vmem>>, vector<8x1xi32>
    %c0_3 = arith.constant 0 : index
    %c0_4 = arith.constant 0 : index
    %2 = vector.load %arg3[%c0_3, %c0_4] : memref<8x8xi32, #tpu.memory_space<vmem>>, vector<8x8xi32>
    %3 = tpu.iota {dimensions = array<i32: 1>} : vector<8x64xi32>
    %4 = vector.broadcast %0 : vector<8x1xi32> to vector<8x64xi32>
    %5 = arith.cmpi eq, %4, %3 : vector<8x64xi32>
    %6 = arith.extui %5 : vector<8x64xi1> to vector<8x64xi32>
    %7 = arith.sitofp %6 : vector<8x64xi32> to vector<8x64xf32>
    %8 = vector.broadcast %1 : vector<8x1xi32> to vector<8x64xi32>
    %9 = arith.cmpi eq, %8, %3 : vector<8x64xi32>
    %10 = arith.extui %9 : vector<8x64xi1> to vector<8x64xi32>
    %11 = arith.sitofp %10 : vector<8x64xi32> to vector<8x64xf32>
    %12 = vector.extract_strided_slice %2 {offsets = [0, 0], sizes = [8, 1], strides = [1, 1]} : vector<8x8xi32> to vector<8x1xi32>
    %13 = vector.broadcast %12 : vector<8x1xi32> to vector<8x64xi32>
    %14 = arith.cmpi eq, %13, %3 : vector<8x64xi32>
    %15 = arith.extui %14 : vector<8x64xi1> to vector<8x64xi32>
    %16 = arith.sitofp %15 : vector<8x64xi32> to vector<8x64xf32>
    %17 = vector.extract_strided_slice %2 {offsets = [0, 1], sizes = [8, 1], strides = [1, 1]} : vector<8x8xi32> to vector<8x1xi32>
    %18 = vector.broadcast %17 : vector<8x1xi32> to vector<8x64xi32>
    %19 = arith.cmpi eq, %18, %3 : vector<8x64xi32>
    %20 = arith.extui %19 : vector<8x64xi1> to vector<8x64xi32>
    %21 = arith.sitofp %20 : vector<8x64xi32> to vector<8x64xf32>
    %22 = arith.addf %16, %21 : vector<8x64xf32>
    %23 = vector.extract_strided_slice %2 {offsets = [0, 2], sizes = [8, 1], strides = [1, 1]} : vector<8x8xi32> to vector<8x1xi32>
    %24 = vector.broadcast %23 : vector<8x1xi32> to vector<8x64xi32>
    %25 = arith.cmpi eq, %24, %3 : vector<8x64xi32>
    %26 = arith.extui %25 : vector<8x64xi1> to vector<8x64xi32>
    %27 = arith.sitofp %26 : vector<8x64xi32> to vector<8x64xf32>
    %28 = arith.addf %22, %27 : vector<8x64xf32>
    %29 = vector.extract_strided_slice %2 {offsets = [0, 3], sizes = [8, 1], strides = [1, 1]} : vector<8x8xi32> to vector<8x1xi32>
    %30 = vector.broadcast %29 : vector<8x1xi32> to vector<8x64xi32>
    %31 = arith.cmpi eq, %30, %3 : vector<8x64xi32>
    %32 = arith.extui %31 : vector<8x64xi1> to vector<8x64xi32>
    %33 = arith.sitofp %32 : vector<8x64xi32> to vector<8x64xf32>
    %34 = arith.addf %28, %33 : vector<8x64xf32>
    %35 = vector.extract_strided_slice %2 {offsets = [0, 4], sizes = [8, 1], strides = [1, 1]} : vector<8x8xi32> to vector<8x1xi32>
    %36 = vector.broadcast %35 : vector<8x1xi32> to vector<8x64xi32>
    %37 = arith.cmpi eq, %36, %3 : vector<8x64xi32>
    %38 = arith.extui %37 : vector<8x64xi1> to vector<8x64xi32>
    %39 = arith.sitofp %38 : vector<8x64xi32> to vector<8x64xf32>
    %40 = arith.addf %34, %39 : vector<8x64xf32>
    %41 = vector.extract_strided_slice %2 {offsets = [0, 5], sizes = [8, 1], strides = [1, 1]} : vector<8x8xi32> to vector<8x1xi32>
    %42 = vector.broadcast %41 : vector<8x1xi32> to vector<8x64xi32>
    %43 = arith.cmpi eq, %42, %3 : vector<8x64xi32>
    %44 = arith.extui %43 : vector<8x64xi1> to vector<8x64xi32>
    %45 = arith.sitofp %44 : vector<8x64xi32> to vector<8x64xf32>
    %46 = arith.addf %40, %45 : vector<8x64xf32>
    %47 = vector.extract_strided_slice %2 {offsets = [0, 6], sizes = [8, 1], strides = [1, 1]} : vector<8x8xi32> to vector<8x1xi32>
    %48 = vector.broadcast %47 : vector<8x1xi32> to vector<8x64xi32>
    %49 = arith.cmpi eq, %48, %3 : vector<8x64xi32>
    %50 = arith.extui %49 : vector<8x64xi1> to vector<8x64xi32>
    %51 = arith.sitofp %50 : vector<8x64xi32> to vector<8x64xf32>
    %52 = arith.addf %46, %51 : vector<8x64xf32>
    %53 = vector.extract_strided_slice %2 {offsets = [0, 7], sizes = [8, 1], strides = [1, 1]} : vector<8x8xi32> to vector<8x1xi32>
    %54 = vector.broadcast %53 : vector<8x1xi32> to vector<8x64xi32>
    %55 = arith.cmpi eq, %54, %3 : vector<8x64xi32>
    %56 = arith.extui %55 : vector<8x64xi1> to vector<8x64xi32>
    %57 = arith.sitofp %56 : vector<8x64xi32> to vector<8x64xf32>
    %58 = arith.addf %52, %57 : vector<8x64xf32>
    %c0_5 = arith.constant 0 : index
    %c0_6 = arith.constant 0 : index
    %59 = vector.load %arg4[%c0_5, %c0_6] : memref<64x128xf32, #tpu.memory_space<vmem>>, vector<64x128xf32>
    %c0_7 = arith.constant 0 : index
    %c0_8 = arith.constant 0 : index
    %60 = vector.load %arg5[%c0_7, %c0_8] : memref<64x128xf32, #tpu.memory_space<vmem>>, vector<64x128xf32>
    %cst = arith.constant dense<0.000000e+00> : vector<8x128xf32>
    %61 = tpu.matmul %7, %59, %cst {dimension_numbers = #tpu.dot_dimension_numbers<[1], [0], [0], [1], [0, 0, 1, 1], [], []>} : vector<8x64xf32>, vector<64x128xf32>, vector<8x128xf32> -> vector<8x128xf32>
    %cst_9 = arith.constant dense<0.000000e+00> : vector<8x128xf32>
    %62 = tpu.matmul %11, %60, %cst_9 {dimension_numbers = #tpu.dot_dimension_numbers<[1], [0], [0], [1], [0, 0, 1, 1], [], []>} : vector<8x64xf32>, vector<64x128xf32>, vector<8x128xf32> -> vector<8x128xf32>
    %cst_10 = arith.constant dense<0.000000e+00> : vector<8x128xf32>
    %63 = tpu.matmul %58, %60, %cst_10 {dimension_numbers = #tpu.dot_dimension_numbers<[1], [0], [0], [1], [0, 0, 1, 1], [], []>} : vector<8x64xf32>, vector<64x128xf32>, vector<8x128xf32> -> vector<8x128xf32>
    %64 = arith.mulf %61, %62 : vector<8x128xf32>
    %cst_11 = arith.constant dense<0.000000e+00> : vector<8xf32>
    %65 = vector.multi_reduction <add>, %64, %cst_11 [1] : vector<8x128xf32> to vector<8xf32>
    %66 = vector.shape_cast %65 : vector<8xf32> to vector<8x1xf32>
    %67 = arith.mulf %63, %61 : vector<8x128xf32>
    %cst_12 = arith.constant dense<0.000000e+00> : vector<8xf32>
    %68 = vector.multi_reduction <add>, %67, %cst_12 [1] : vector<8x128xf32> to vector<8xf32>
    %69 = vector.shape_cast %68 : vector<8xf32> to vector<8x1xf32>
    %cst_13 = arith.constant 0.000000e+00 : f32
    %70 = vector.broadcast %cst_13 : f32 to vector<8x1xf32>
    %71 = arith.minimumf %66, %70 : vector<8x1xf32>
    %72 = math.absf %66 : vector<8x1xf32>
    %cst_14 = arith.constant 0.000000e+00 : f32
    %73 = vector.broadcast %cst_14 : f32 to vector<8x1xf32>
    %74 = arith.subf %73, %72 : vector<8x1xf32>
    %75 = math.exp %74 : vector<8x1xf32>
    %76 = math.log1p %75 : vector<8x1xf32>
    %77 = arith.subf %71, %76 : vector<8x1xf32>
    %cst_15 = arith.constant 0.000000e+00 : f32
    %78 = vector.broadcast %cst_15 : f32 to vector<8x1xf32>
    %79 = arith.subf %78, %69 : vector<8x1xf32>
    %cst_16 = arith.constant 0.000000e+00 : f32
    %80 = vector.broadcast %cst_16 : f32 to vector<8x1xf32>
    %81 = arith.minimumf %79, %80 : vector<8x1xf32>
    %82 = math.absf %79 : vector<8x1xf32>
    %cst_17 = arith.constant 0.000000e+00 : f32
    %83 = vector.broadcast %cst_17 : f32 to vector<8x1xf32>
    %84 = arith.subf %83, %82 : vector<8x1xf32>
    %85 = math.exp %84 : vector<8x1xf32>
    %86 = math.log1p %85 : vector<8x1xf32>
    %87 = arith.subf %81, %86 : vector<8x1xf32>
    %88 = arith.addf %77, %87 : vector<8x1xf32>
    %c8_i32 = arith.constant 8 : i32
    %89 = arith.muli %arg0, %c8_i32 : i32
    %90 = tpu.iota {dimensions = array<i32: 0>} : vector<8x1xi32>
    %91 = vector.broadcast %89 : i32 to vector<8x1xi32>
    %92 = arith.addi %91, %90 : vector<8x1xi32>
    %c16_i32 = arith.constant 16 : i32
    %93 = vector.broadcast %c16_i32 : i32 to vector<8x1xi32>
    %94 = arith.cmpi slt, %92, %93 : vector<8x1xi32>
    %cst_18 = arith.constant 0.000000e+00 : f32
    %95 = vector.broadcast %cst_18 : f32 to vector<8x1xf32>
    %96 = arith.select %94, %88, %95 : vector<8x1xi1>, vector<8x1xf32>
    %97 = vector.shape_cast %96 : vector<8x1xf32> to vector<1x8x1xf32>
    %cst_19 = arith.constant dense<0.000000e+00> : vector<1xf32>
    %98 = vector.multi_reduction <add>, %97, %cst_19 [1, 2] : vector<1x8x1xf32> to vector<1xf32>
    %99 = vector.shape_cast %98 : vector<1xf32> to vector<1x1x1xf32>
    %100 = vector.extract %99[0, 0, 0] : f32 from vector<1x1x1xf32>
    %101 = tpu.iota {dimensions = array<i32: 0>} : vector<8x128xi32>
    %102 = tpu.iota {dimensions = array<i32: 1>} : vector<8x128xi32>
    %c0_i32 = arith.constant 0 : i32
    %103 = vector.broadcast %c0_i32 : i32 to vector<8x128xi32>
    %104 = arith.cmpi eq, %101, %103 : vector<8x128xi32>
    %c0_i32_20 = arith.constant 0 : i32
    %105 = vector.broadcast %c0_i32_20 : i32 to vector<8x128xi32>
    %106 = arith.cmpi eq, %102, %105 : vector<8x128xi32>
    %107 = arith.andi %104, %106 : vector<8x128xi1>
    %cst_21 = arith.constant 0.000000e+00 : f32
    %108 = vector.broadcast %100 : f32 to vector<8x128xf32>
    %109 = vector.broadcast %cst_21 : f32 to vector<8x128xf32>
    %110 = arith.select %107, %108, %109 : vector<8x128xi1>, vector<8x128xf32>
    %c0_22 = arith.constant 0 : index
    %c0_23 = arith.constant 0 : index
    %111 = vector.load %arg6[%c0_22, %c0_23] : memref<8x128xf32, #tpu.memory_space<vmem>>, vector<8x128xf32>
    tpu.vector_store %arg6[%c0_22, %c0_23], %110 {strides = array<i32>} : memref<8x128xf32, #tpu.memory_space<vmem>>, vector<8x128xf32>,
    return
  }
  func.func @transform_0(%arg0: i32) -> (i32, i32) {
    %c0_i32 = arith.constant 0 : i32
    %c0_i32_0 = arith.constant 0 : i32
    return %arg0, %c0_i32 : i32, i32
  }
  func.func @transform_1(%arg0: i32) -> (i32, i32) {
    %c0_i32 = arith.constant 0 : i32
    %c0_i32_0 = arith.constant 0 : i32
    return %arg0, %c0_i32 : i32, i32
  }
  func.func @transform_2(%arg0: i32) -> (i32, i32) {
    %c0_i32 = arith.constant 0 : i32
    %c0_i32_0 = arith.constant 0 : i32
    return %arg0, %c0_i32 : i32, i32
  }
  func.func @transform_3(%arg0: i32) -> (i32, i32) {
    %c0_i32 = arith.constant 0 : i32
    %c0_i32_0 = arith.constant 0 : i32
    %c0_i32_1 = arith.constant 0 : i32
    return %c0_i32, %c0_i32_0 : i32, i32
  }
  func.func @transform_4(%arg0: i32) -> (i32, i32) {
    %c0_i32 = arith.constant 0 : i32
    %c0_i32_0 = arith.constant 0 : i32
    %c0_i32_1 = arith.constant 0 : i32
    return %c0_i32, %c0_i32_0 : i32, i32
  }
  func.func @transform_5(%arg0: i32) -> (i32, i32) {
    %c0_i32 = arith.constant 0 : i32
    %c0_i32_0 = arith.constant 0 : i32
    return %arg0, %c0_i32 : i32, i32
  }
}

</mosaic_0001>

<llo_original>
// kernel: tpu_custom_call.1
$region0: #{tpu_custom_call.1}
  #allocation0 [shape = 'u32[]', space=smem, size = 0x4, offset = 0x4, fixed_abs, tag = 'smem constant byte address 0x4 - core index']
  #allocation1 [shape = 'u32[144,128]{1,0:T(1,128)}', space=vmem, size = 0x12000, scoped, tag = 'internal scratch']
  %s0 = inlined_call_operand.vmem [shape: s32[16,1], index: 0, kind: input, shape index: {}]
  %s1 = inlined_call_operand.vmem [shape: s32[16,1], index: 1, kind: input, shape index: {}]
  %s2 = inlined_call_operand.vmem [shape: s32[16,8], index: 2, kind: input, shape index: {}]
  %s3 = inlined_call_operand.vmem [shape: f32[64,128], index: 3, kind: input, shape index: {}]
  %s4 = inlined_call_operand.hbm [shape: f32[64,128], index: 4, kind: input, shape index: {}]
  %s5 = inlined_call_operand.hbm [shape: f32[16,128], index: 5, kind: output, shape index: {}]
  %s6 = sld [smem:[#allocation0]]
  $region57: #{tpu_custom_call.1} parent=0
    _
  %s8 = ssub.s32 1, %s6
  %s9 = scalar_select 0, %s8, %s6
  $region1: #{tpu_custom_call.1} parent=0
    #allocation2 [shape = 'u8[32768]{0}', space=vmem, size = 0x8000, scoped, tag = 'input window, operand 4, single buffered']
    #allocation3 [shape = 's32[2]{0}', space=sflag, size = 0x8, scoped, tag = 'scoped memory for tpu_custom_call.1']
    #allocation4 [shape = 's32[2]{0}', space=sflag, size = 0x8, scoped, tag = 'scoped memory for tpu_custom_call.1']
    #allocation5 [shape = 'u8[8192]{0}', space=vmem, size = 0x2000, scoped, tag = 'output window, operand 0']
    %10 = vsyncpa [#allocation3], 0
    %11 = vsyncpa [#allocation4], 0
    %s12 = scalar_lea.sflag [#allocation4], 1
    %13 = vsyncpa %s12, 0
    loop: start=0, step=1, limit=4
    $region2: #{tpu_custom_call.1} parent=1 // loop_pre_header
      _
    $region3: #{tpu_custom_call.1} parent=1 // loop_header
      %s15 = sphi 0, %s19
      %p16 = scmp.ge.s32.totalorder %s15, 4
      %s25 = sphi 0, %s27
      %s28 = sphi 0, %s25
      %s29 = sphi 0, %s28
      %s45 = sphi 0, %s29
      %s51 = sphi 0, %s53
      %s54 = sphi 0, %s51
      %s55 = sphi 0, %s54
      %s71 = sphi 0, %s55
      %s77 = sphi 0, %s79
      %s80 = sphi 0, %s77
      %s81 = sphi 0, %s80
      %s97 = sphi 0, %s81
      %s101 = sphi 0, %s101
      %s103 = sphi 0, %s101
      %s104 = sphi 0, %s103
      %s118 = sphi 0, %s104
      %s122 = sphi 0, %s122
      %s124 = sphi 0, %s122
      %s125 = sphi 0, %s124
      %s139 = sphi 0, %s125
      %s145 = sphi 0, %s147
      %s148 = sphi 0, %s145
      %s149 = sphi 0, %s148
      %s165 = sphi 0, %s149
    $region4: #{tpu_custom_call.1} parent=1 // loop_header_branch
      %18 = sbr.rel (%p16) target = $region8
    $region5: #{tpu_custom_call.1} parent=1 // loop_body
      %s20 = ssub.s32 %s15, 1
      %s21 = ssub.s32 %s15, 2
      %s22 = sadd.s32 %s15, 1
      %s23 = ssub.s32 %s15, %s22
      %p24 = scmp.eq.s32.totalorder %s23, 0
      %s26 = sadd.s32 %s25, 1
      %s27 = scalar_select %p24, %s25, %s26
      %p30 = pneg %p24
      %p31 = scmp.eq.s32.totalorder %s15, 1
      %p32 = por %p30, %p31
      %p33 = scmp.ne.s32.totalorder %s25, %s28
      %p34 = scmp.eq.s32.totalorder %s15, 0
      %p35 = por %p33, %p34
      %p36 = scmp.ne.s32.totalorder %s25, %s28
      %p37 = scmp.eq.s32.totalorder %s20, 1
      %p38 = por %p36, %p37
      %p39 = scmp.ne.s32.totalorder %s28, %s29
      %p40 = scmp.eq.s32.totalorder %s20, 0
      %p41 = por %p39, %p40
      %p42 = scmp.ne.s32.totalorder %s28, %s29
      %p43 = scmp.eq.s32.totalorder %s21, 1
      %p44 = por %p42, %p43
      %p46 = scmp.ne.s32.totalorder %s29, %s45
      %p47 = scmp.eq.s32.totalorder %s21, 0
      %p48 = por %p46, %p47
      %s49 = ssub.s32 %s15, %s22
      %p50 = scmp.eq.s32.totalorder %s49, 0
      %s52 = sadd.s32 %s51, 1
      %s53 = scalar_select %p50, %s51, %s52
      %p56 = pneg %p50
      %p57 = scmp.eq.s32.totalorder %s15, 1
      %p58 = por %p56, %p57
      %p59 = scmp.ne.s32.totalorder %s51, %s54
      %p60 = scmp.eq.s32.totalorder %s15, 0
      %p61 = por %p59, %p60
      %p62 = scmp.ne.s32.totalorder %s51, %s54
      %p63 = scmp.eq.s32.totalorder %s20, 1
      %p64 = por %p62, %p63
      %p65 = scmp.ne.s32.totalorder %s54, %s55
      %p66 = scmp.eq.s32.totalorder %s20, 0
      %p67 = por %p65, %p66
      %p68 = scmp.ne.s32.totalorder %s54, %s55
      %p69 = scmp.eq.s32.totalorder %s21, 1
      %p70 = por %p68, %p69
      %p72 = scmp.ne.s32.totalorder %s55, %s71
      %p73 = scmp.eq.s32.totalorder %s21, 0
      %p74 = por %p72, %p73
      %s75 = ssub.s32 %s15, %s22
      %p76 = scmp.eq.s32.totalorder %s75, 0
      %s78 = sadd.s32 %s77, 1
      %s79 = scalar_select %p76, %s77, %s78
      %p82 = pneg %p76
      %p83 = scmp.eq.s32.totalorder %s15, 1
      %p84 = por %p82, %p83
      %p85 = scmp.ne.s32.totalorder %s77, %s80
      %p86 = scmp.eq.s32.totalorder %s15, 0
      %p87 = por %p85, %p86
      %p88 = scmp.ne.s32.totalorder %s77, %s80
      %p89 = scmp.eq.s32.totalorder %s20, 1
      %p90 = por %p88, %p89
      %p91 = scmp.ne.s32.totalorder %s80, %s81
      %p92 = scmp.eq.s32.totalorder %s20, 0
      %p93 = por %p91, %p92
      %p94 = scmp.ne.s32.totalorder %s80, %s81
      %p95 = scmp.eq.s32.totalorder %s21, 1
      %p96 = por %p94, %p95
      %p98 = scmp.ne.s32.totalorder %s81, %s97
      %p99 = scmp.eq.s32.totalorder %s21, 0
      %p100 = por %p98, %p99
      %s102 = sadd.s32 %s101, 1
      %p105 = scmp.eq.s32.totalorder %s15, 1
      %p106 = scmp.ne.s32.totalorder %s101, %s103
      %p107 = scmp.eq.s32.totalorder %s15, 0
      %p108 = por %p106, %p107
      %p109 = scmp.ne.s32.totalorder %s101, %s103
      %p110 = scmp.eq.s32.totalorder %s20, 1
      %p111 = por %p109, %p110
      %p112 = scmp.ne.s32.totalorder %s103, %s104
      %p113 = scmp.eq.s32.totalorder %s20, 0
      %p114 = por %p112, %p113
      %p115 = scmp.ne.s32.totalorder %s103, %s104
      %p116 = scmp.eq.s32.totalorder %s21, 1
      %p117 = por %p115, %p116
      %p119 = scmp.ne.s32.totalorder %s104, %s118
      %p120 = scmp.eq.s32.totalorder %s21, 0
      %p121 = por %p119, %p120
      %s123 = sadd.s32 %s122, 1
      %p126 = scmp.eq.s32.totalorder %s15, 1
      %p127 = scmp.ne.s32.totalorder %s122, %s124
      %p128 = scmp.eq.s32.totalorder %s15, 0
      %p129 = por %p127, %p128
      %p130 = scmp.ne.s32.totalorder %s122, %s124
      %p131 = scmp.eq.s32.totalorder %s20, 1
      %p132 = por %p130, %p131
      %p133 = scmp.ne.s32.totalorder %s124, %s125
      %p134 = scmp.eq.s32.totalorder %s20, 0
      %p135 = por %p133, %p134
      %p136 = scmp.ne.s32.totalorder %s124, %s125
      %p137 = scmp.eq.s32.totalorder %s21, 1
      %p138 = por %p136, %p137
      %p140 = scmp.ne.s32.totalorder %s125, %s139
      %p141 = scmp.eq.s32.totalorder %s21, 0
      %p142 = por %p140, %p141
      %s143 = ssub.s32 %s15, %s22
      %p144 = scmp.eq.s32.totalorder %s143, 0
      %s146 = sadd.s32 %s145, 1
      %s147 = scalar_select %p144, %s145, %s146
      %p150 = pneg %p144
      %p151 = scmp.eq.s32.totalorder %s15, 1
      %p152 = por %p150, %p151
      %p153 = scmp.ne.s32.totalorder %s145, %s148
      %p154 = scmp.eq.s32.totalorder %s15, 0
      %p155 = por %p153, %p154
      %p156 = scmp.ne.s32.totalorder %s145, %s148
      %p157 = scmp.eq.s32.totalorder %s20, 1
      %p158 = por %p156, %p157
      %p159 = scmp.ne.s32.totalorder %s148, %s149
      %p160 = scmp.eq.s32.totalorder %s20, 0
      %p161 = por %p159, %p160
      %p162 = scmp.ne.s32.totalorder %s148, %s149
      %p163 = scmp.eq.s32.totalorder %s21, 1
      %p164 = por %p162, %p163
      %p166 = scmp.ne.s32.totalorder %s149, %s165
      %p167 = scmp.eq.s32.totalorder %s21, 0
      %p168 = por %p166, %p167
      %p169 = scmp.le.s32.totalorder 1, %s15
      %p170 = scmp.lt.s32.totalorder %s15, 3
      %p171 = pnand %p169, %p170
      %p172 = pneg %p171
      // Predicated region
      $region9: #{tpu_custom_call.1} parent=5 // pred_check
        _
      $region10: #{tpu_custom_call.1} parent=5 // pred_check_branch
        %174 = sbr.rel (%p171) target = $region12
      $region11: #{tpu_custom_call.1} parent=5 // pred_region
        %s175 = ssub.s32 %s15, 1
        // Predicated region
        $region13: #{tpu_custom_call.1} parent=11 // pred_check
          %p176 = pneg %p114
        $region14: #{tpu_custom_call.1} parent=11 // pred_check_branch
          %178 = sbr.rel (%p176) target = $region16
        $region15: #{tpu_custom_call.1} parent=11 // pred_region
          _
        $region16: #{tpu_custom_call.1} parent=11 // pred_fallthru
          _
        // Predicated region
        $region17: #{tpu_custom_call.1} parent=11 // pred_check
          %p179 = pneg %p135
        $region18: #{tpu_custom_call.1} parent=11 // pred_check_branch
          %181 = sbr.rel (%p179) target = $region20
        $region19: #{tpu_custom_call.1} parent=11 // pred_region
          %s183 = ssub.s32 1024, 1024
          %184 = vsyncadd [#allocation3], %s183
          %s185 = sshll.u32 [#allocation2], 4
          %s186 = int_to_ptr.vmem [resolvable:$true] %s185
          %191 = dma.hbm_to_vmem [thread:$0]  %s4, 1024, %s186, [#allocation3], 128, 128, 8
        $region20: #{tpu_custom_call.1} parent=11 // pred_fallthru
          _
      $region12: #{tpu_custom_call.1} parent=5 // pred_fallthru
        _
      %p192 = scmp.lt.s32.totalorder %s15, 2
      // Predicated region
      $region21: #{tpu_custom_call.1} parent=5 // pred_check
        %p193 = pneg %p192
      $region22: #{tpu_custom_call.1} parent=5 // pred_check_branch
        %195 = sbr.rel (%p193) target = $region24
      $region23: #{tpu_custom_call.1} parent=5 // pred_region
        // Predicated region
        $region25: #{tpu_custom_call.1} parent=23 // pred_check
          %p196 = pneg %p35
        $region26: #{tpu_custom_call.1} parent=23 // pred_check_branch
          %198 = sbr.rel (%p196) target = $region28
        $region27: #{tpu_custom_call.1} parent=23 // pred_region
          %p199 = scmp.lt.s32.totalorder %s15, 1
          %s200 = scalar_select %p199, %s15, 1
          %s201 = smul.addr %s200, 8
          %s202 = scalar_lea.vmem %s0, %s201
        $region28: #{tpu_custom_call.1} parent=23 // pred_fallthru
          _
        // Predicated region
        $region29: #{tpu_custom_call.1} parent=23 // pred_check
          %p203 = pneg %p61
        $region30: #{tpu_custom_call.1} parent=23 // pred_check_branch
          %205 = sbr.rel (%p203) target = $region32
        $region31: #{tpu_custom_call.1} parent=23 // pred_region
          %p206 = scmp.lt.s32.totalorder %s15, 1
          %s207 = scalar_select %p206, %s15, 1
          %s208 = smul.addr %s207, 8
          %s209 = scalar_lea.vmem %s1, %s208
        $region32: #{tpu_custom_call.1} parent=23 // pred_fallthru
          _
        // Predicated region
        $region33: #{tpu_custom_call.1} parent=23 // pred_check
          %p210 = pneg %p87
        $region34: #{tpu_custom_call.1} parent=23 // pred_check_branch
          %212 = sbr.rel (%p210) target = $region36
        $region35: #{tpu_custom_call.1} parent=23 // pred_region
          %p213 = scmp.lt.s32.totalorder %s15, 1
          %s214 = scalar_select %p213, %s15, 1
          %s215 = smul.addr %s214, 8
          %s216 = scalar_lea.vmem %s2, %s215
        $region36: #{tpu_custom_call.1} parent=23 // pred_fallthru
          _
      $region24: #{tpu_custom_call.1} parent=5 // pred_fallthru
        _
      %p217 = scmp.le.s32.totalorder 1, %s15
      %p218 = scmp.lt.s32.totalorder %s15, 3
      %p219 = pnand %p217, %p218
      %p220 = pneg %p219
      // Predicated region
      $region37: #{tpu_custom_call.1} parent=5 // pred_check
        _
      $region38: #{tpu_custom_call.1} parent=5 // pred_check_branch
        %222 = sbr.rel (%p219) target = $region40
      $region39: #{tpu_custom_call.1} parent=5 // pred_region
        %s223 = ssub.s32 %s15, 1
        // Predicated region
        $region41: #{tpu_custom_call.1} parent=39 // pred_check
          %p224 = pneg %p135
        $region42: #{tpu_custom_call.1} parent=39 // pred_check_branch
          %226 = sbr.rel (%p224) target = $region44
        $region43: #{tpu_custom_call.1} parent=39 // pred_region
          %227 = dma.done [#allocation3], 1024
        $region44: #{tpu_custom_call.1} parent=39 // pred_fallthru
          _
        %p228 = scmp.lt.s32.totalorder %s20, 1
        %s229 = scalar_select %p228, %s20, 1
        %s230 = smul.addr %s229, 8
        %s231 = scalar_lea.vmem %s0, %s230
        %p232 = pneg %p41
        %p233 = pneg %p38
        %p234 = scmp.lt.s32.totalorder %s20, 1
        %s235 = scalar_select %p234, %s20, 1
        %s236 = smul.addr %s235, 8
        %s237 = scalar_lea.vmem %s1, %s236
        %p238 = pneg %p67
        %p239 = pneg %p64
        %p240 = scmp.lt.s32.totalorder %s20, 1
        %s241 = scalar_select %p240, %s20, 1
        %s242 = smul.addr %s241, 8
        %s243 = scalar_lea.vmem %s2, %s242
        %p244 = pneg %p93
        %p245 = pneg %p90
        %p246 = pneg %p114
        %p247 = pneg %p111
        %p248 = pneg %p135
        %p249 = pneg %p132
        %p250 = pneg %p161
        %p251 = pneg %p158
        %s252 = sand.u32 %s148, 1
        %s253 = scalar_lea.sflag [#allocation4], %s252
        %s254 = sand.u32 %s148, 1
        %s255 = smul.addr %s254, 8
        %s256 = scalar_lea.vmem [#allocation5], %s255
        %p257 = scmp.lt.s32.totalorder %s20, 1
        %s258 = scalar_select %p257, %s20, 1
        %s259 = smul.addr %s258, 8
        %s260 = scalar_lea.vmem %s0, %s259
        %p261 = scmp.lt.s32.totalorder %s20, 1
        %s262 = scalar_select %p261, %s20, 1
        %s263 = smul.addr %s262, 8
        %s264 = scalar_lea.vmem %s1, %s263
        %p265 = scmp.lt.s32.totalorder %s20, 1
        %s266 = scalar_select %p265, %s20, 1
        %s267 = smul.addr %s266, 8
        %s268 = scalar_lea.vmem %s2, %s267
        %v269 = vld [vmem:[%s260] sm:$0xff]
        %v270 = vld [vmem:[%s264] sm:$0xff]
        %v271 = vld [vmem:[%s268] sm:$0xff]
        %v272 = vlaneseq
        %v273 = vand.u32 %v272, 127
        %274 = vset.pattern.permute.xlu0 0
        %275 = vperm.xlu0 %274, %v269
        %v276 = vpop.permute.xlu0 %275
        %vm277 = vcmp.eq.s32.totalorder %v276, %v273
        %v278 = vsel %vm277, 1, 0
        %v279 = vcvt.s32.f32 %v278
        %280 = vset.pattern.permute.xlu0 0
        %281 = vperm.xlu0 %280, %v270
        %v282 = vpop.permute.xlu0 %281
        %vm283 = vcmp.eq.s32.totalorder %v282, %v273
        %v284 = vsel %vm283, 1, 0
        %v285 = vcvt.s32.f32 %v284
        %286 = vset.pattern.permute.xlu0 0
        %287 = vperm.xlu0 %286, %v271
        %v288 = vpop.permute.xlu0 %287
        %vm289 = vcmp.eq.s32.totalorder %v288, %v273
        %v290 = vsel %vm289, 1, 0
        %v291 = vcvt.s32.f32 %v290
        %292 = vset.pattern.permute.xlu0 1
        %293 = vperm.xlu0 %292, %v271
        %v294 = vpop.permute.xlu0 %293
        %vm295 = vcmp.eq.s32.totalorder %v294, %v273
        %v296 = vsel %vm295, 1, 0
        %v297 = vcvt.s32.f32 %v296
        %v298 = vadd.f32 %v291, %v297
        %299 = vset.pattern.permute.xlu0 2
        %300 = vperm.xlu0 %299, %v271
        %v301 = vpop.permute.xlu0 %300
        %vm302 = vcmp.eq.s32.totalorder %v301, %v273
        %v303 = vsel %vm302, 1, 0
        %v304 = vcvt.s32.f32 %v303
        %v305 = vadd.f32 %v298, %v304
        %306 = vset.pattern.permute.xlu0 3
        %307 = vperm.xlu0 %306, %v271
        %v308 = vpop.permute.xlu0 %307
        %vm309 = vcmp.eq.s32.totalorder %v308, %v273
        %v310 = vsel %vm309, 1, 0
        %v311 = vcvt.s32.f32 %v310
        %v312 = vadd.f32 %v305, %v311
        %313 = vset.pattern.permute.xlu0 4
        %314 = vperm.xlu0 %313, %v271
        %v315 = vpop.permute.xlu0 %314
        %vm316 = vcmp.eq.s32.totalorder %v315, %v273
        %v317 = vsel %vm316, 1, 0
        %v318 = vcvt.s32.f32 %v317
        %v319 = vadd.f32 %v312, %v318
        %320 = vset.pattern.permute.xlu0 5
        %321 = vperm.xlu0 %320, %v271
        %v322 = vpop.permute.xlu0 %321
        %vm323 = vcmp.eq.s32.totalorder %v322, %v273
        %v324 = vsel %vm323, 1, 0
        %v325 = vcvt.s32.f32 %v324
        %v326 = vadd.f32 %v319, %v325
        %327 = vset.pattern.permute.xlu0 6
        %328 = vperm.xlu0 %327, %v271
        %v329 = vpop.permute.xlu0 %328
        %vm330 = vcmp.eq.s32.totalorder %v329, %v273
        %v331 = vsel %vm330, 1, 0
        %v332 = vcvt.s32.f32 %v331
        %v333 = vadd.f32 %v326, %v332
        %334 = vset.pattern.permute.xlu0 7
        %335 = vperm.xlu0 %334, %v271
        %v336 = vpop.permute.xlu0 %335
        %vm337 = vcmp.eq.s32.totalorder %v336, %v273
        %v338 = vsel %vm337, 1, 0
        %v339 = vcvt.s32.f32 %v338
        %v340 = vadd.f32 %v333, %v339
        %v341 = vld [vmem:[%s3] sm:$0xff]
        %v342 = vld [vmem:[%s3 + $0x8] sm:$0xff]
        %v343 = vld [vmem:[%s3 + $0x10] sm:$0xff]
        %v344 = vld [vmem:[%s3 + $0x18] sm:$0xff]
        %v345 = vld [vmem:[%s3 + $0x20] sm:$0xff]
        %v346 = vld [vmem:[%s3 + $0x28] sm:$0xff]
        %v347 = vld [vmem:[%s3 + $0x30] sm:$0xff]
        %v348 = vld [vmem:[%s3 + $0x38] sm:$0xff]
        %v349 = vld [vmem:[#allocation2] sm:$0xff]
        %v350 = vld [vmem:[#allocation2 + $0x8] sm:$0xff]
        %v351 = vld [vmem:[#allocation2 + $0x10] sm:$0xff]
        %v352 = vld [vmem:[#allocation2 + $0x18] sm:$0xff]
        %v353 = vld [vmem:[#allocation2 + $0x20] sm:$0xff]
        %v354 = vld [vmem:[#allocation2 + $0x28] sm:$0xff]
        %v355 = vld [vmem:[#allocation2 + $0x30] sm:$0xff]
        %v356 = vld [vmem:[#allocation2 + $0x38] sm:$0xff]
        %vm357 = vcmask 523264
        %v359 = vsel %vm357, %v279, 0
        %361 = vmatprep.subr.mxu0 0.0
        %362 = vmatpush1.msra.mxu0 %v341
        %363 = vmatprep.subr.mxu0 0.0
        %364 = vmatpush1.msra.mxu0 %v342
        %365 = vmatprep.subr.mxu0 0.0
        %366 = vmatpush1.msra.mxu0 %v343
        %367 = vmatprep.subr.mxu0 0.0
        %368 = vmatpush1.msra.mxu0 %v344
        %369 = vmatprep.subr.mxu0 0.0
        %370 = vmatpush1.msra.mxu0 %v345
        %371 = vmatprep.subr.mxu0 0.0
        %372 = vmatpush1.msra.mxu0 %v346
        %373 = vmatprep.subr.mxu0 0.0
        %374 = vmatpush1.msra.mxu0 %v347
        %375 = vmatprep.subr.mxu0 0.0
        %376 = vmatpush1.msra.mxu0 %v348
        %377 = vmatprep.subr.mxu0 0.0
        %378 = vmatpush1.msra.mxu0 0.0
        %379 = vmatprep.subr.mxu0 0.0
        %380 = vmatpush1.msra.mxu0 0.0
        %381 = vmatprep.subr.mxu0 0.0
        %382 = vmatpush1.msra.mxu0 0.0
        %383 = vmatprep.subr.mxu0 0.0
        %384 = vmatpush1.msra.mxu0 0.0
        %385 = vmatprep.subr.mxu0 0.0
        %386 = vmatpush1.msra.mxu0 0.0
        %387 = vmatprep.subr.mxu0 0.0
        %388 = vmatpush1.msra.mxu0 0.0
        %389 = vmatprep.subr.mxu0 0.0
        %390 = vmatpush1.msra.mxu0 0.0
        %391 = vmatprep.subr.mxu0 0.0
        %392 = vmatpush1.msra.mxu0 0.0
        %393 = vmatprep.subr.mxu0 0.0
        %394 = vmatpush1.msra.mxu0 0.0
        %395 = vmatprep.subr.mxu0 0.0
        %396 = vmatpush1.msra.mxu0 0.0
        %397 = vmatprep.subr.mxu0 0.0
        %398 = vmatpush1.msra.mxu0 0.0
        %399 = vmatprep.subr.mxu0 0.0
        %400 = vmatpush1.msra.mxu0 0.0
        %401 = vmatprep.subr.mxu0 0.0
        %402 = vmatpush1.msra.mxu0 0.0
        %403 = vmatprep.subr.mxu0 0.0
        %404 = vmatpush1.msra.mxu0 0.0
        %405 = vmatprep.subr.mxu0 0.0
        %406 = vmatpush1.msra.mxu0 0.0
        %407 = vmatprep.subr.mxu0 0.0
        %408 = vmatpush1.msra.mxu0 0.0
        %409 = vmatprep.subr.mxu0 0.0
        %410 = vmatpush1.msra.mxu0 0.0
        %411 = vmatprep.subr.mxu0 0.0
        %412 = vmatpush1.msra.mxu0 0.0
        %413 = vmatprep.subr.mxu0 0.0
        %414 = vmatpush1.msra.mxu0 0.0
        %415 = vmatprep.subr.mxu0 0.0
        %416 = vmatpush1.msra.mxu0 0.0
        %417 = vmatprep.subr.mxu0 0.0
        %418 = vmatpush1.msra.mxu0 0.0
        %419 = vmatprep.subr.mxu0 0.0
        %420 = vmatpush1.msra.mxu0 0.0
        %421 = vmatprep.subr.mxu0 0.0
        %422 = vmatpush1.msra.mxu0 0.0
        %423 = vmatprep.subr.mxu0 0.0
        %424 = vmatpush1.msra.mxu0 0.0
        %425 = vmatprep.mubr.f32.mxu0 0.0
        %426 = vmatmul.mubr.f32.gmra.mrb[0].mxu0 %v359
        %v427 = vpop.f32.mrb[0].mxu0
        %v428 = vadd.f32 0.0, %v427
        %v429 = vpop.f32.mrb[0].mxu0
        %430 = vdwg.mxu0
        %v432 = vsel %vm357, %v285, 0
        %434 = vmatprep.subr.mxu0 0.0
        %435 = vmatpush1.msra.mxu0 %v349
        %436 = vmatprep.subr.mxu0 0.0
        %437 = vmatpush1.msra.mxu0 %v350
        %438 = vmatprep.subr.mxu0 0.0
        %439 = vmatpush1.msra.mxu0 %v351
        %440 = vmatprep.subr.mxu0 0.0
        %441 = vmatpush1.msra.mxu0 %v352
        %442 = vmatprep.subr.mxu0 0.0
        %443 = vmatpush1.msra.mxu0 %v353
        %444 = vmatprep.subr.mxu0 0.0
        %445 = vmatpush1.msra.mxu0 %v354
        %446 = vmatprep.subr.mxu0 0.0
        %447 = vmatpush1.msra.mxu0 %v355
        %448 = vmatprep.subr.mxu0 0.0
        %449 = vmatpush1.msra.mxu0 %v356
        %450 = vmatprep.subr.mxu0 0.0
        %451 = vmatpush1.msra.mxu0 0.0
        %452 = vmatprep.subr.mxu0 0.0
        %453 = vmatpush1.msra.mxu0 0.0
        %454 = vmatprep.subr.mxu0 0.0
        %455 = vmatpush1.msra.mxu0 0.0
        %456 = vmatprep.subr.mxu0 0.0
        %457 = vmatpush1.msra.mxu0 0.0
        %458 = vmatprep.subr.mxu0 0.0
        %459 = vmatpush1.msra.mxu0 0.0
        %460 = vmatprep.subr.mxu0 0.0
        %461 = vmatpush1.msra.mxu0 0.0
        %462 = vmatprep.subr.mxu0 0.0
        %463 = vmatpush1.msra.mxu0 0.0
        %464 = vmatprep.subr.mxu0 0.0
        %465 = vmatpush1.msra.mxu0 0.0
        %466 = vmatprep.subr.mxu0 0.0
        %467 = vmatpush1.msra.mxu0 0.0
        %468 = vmatprep.subr.mxu0 0.0
        %469 = vmatpush1.msra.mxu0 0.0
        %470 = vmatprep.subr.mxu0 0.0
        %471 = vmatpush1.msra.mxu0 0.0
        %472 = vmatprep.subr.mxu0 0.0
        %473 = vmatpush1.msra.mxu0 0.0
        %474 = vmatprep.subr.mxu0 0.0
        %475 = vmatpush1.msra.mxu0 0.0
        %476 = vmatprep.subr.mxu0 0.0
        %477 = vmatpush1.msra.mxu0 0.0
        %478 = vmatprep.subr.mxu0 0.0
        %479 = vmatpush1.msra.mxu0 0.0
        %480 = vmatprep.subr.mxu0 0.0
        %481 = vmatpush1.msra.mxu0 0.0
        %482 = vmatprep.subr.mxu0 0.0
        %483 = vmatpush1.msra.mxu0 0.0
        %484 = vmatprep.subr.mxu0 0.0
        %485 = vmatpush1.msra.mxu0 0.0
        %486 = vmatprep.subr.mxu0 0.0
        %487 = vmatpush1.msra.mxu0 0.0
        %488 = vmatprep.subr.mxu0 0.0
        %489 = vmatpush1.msra.mxu0 0.0
        %490 = vmatprep.subr.mxu0 0.0
        %491 = vmatpush1.msra.mxu0 0.0
        %492 = vmatprep.subr.mxu0 0.0
        %493 = vmatpush1.msra.mxu0 0.0
        %494 = vmatprep.subr.mxu0 0.0
        %495 = vmatpush1.msra.mxu0 0.0
        %496 = vmatprep.subr.mxu0 0.0
        %497 = vmatpush1.msra.mxu0 0.0
        %498 = vmatprep.mubr.f32.mxu0 0.0
        %499 = vmatmul.mubr.f32.gmra.mrb[0].mxu0 %v432
        %v500 = vpop.f32.mrb[0].mxu0
        %v501 = vadd.f32 0.0, %v500
        %v502 = vpop.f32.mrb[0].mxu0
        %503 = vdwg.mxu0
        %v505 = vsel %vm357, %v340, 0
        %507 = vmatprep.subr.mxu0 0.0
        %508 = vmatpush1.msra.mxu0 %v349
        %509 = vmatprep.subr.mxu0 0.0
        %510 = vmatpush1.msra.mxu0 %v350
        %511 = vmatprep.subr.mxu0 0.0
        %512 = vmatpush1.msra.mxu0 %v351
        %513 = vmatprep.subr.mxu0 0.0
        %514 = vmatpush1.msra.mxu0 %v352
        %515 = vmatprep.subr.mxu0 0.0
        %516 = vmatpush1.msra.mxu0 %v353
        %517 = vmatprep.subr.mxu0 0.0
        %518 = vmatpush1.msra.mxu0 %v354
        %519 = vmatprep.subr.mxu0 0.0
        %520 = vmatpush1.msra.mxu0 %v355
        %521 = vmatprep.subr.mxu0 0.0
        %522 = vmatpush1.msra.mxu0 %v356
        %523 = vmatprep.subr.mxu0 0.0
        %524 = vmatpush1.msra.mxu0 0.0
        %525 = vmatprep.subr.mxu0 0.0
        %526 = vmatpush1.msra.mxu0 0.0
        %527 = vmatprep.subr.mxu0 0.0
        %528 = vmatpush1.msra.mxu0 0.0
        %529 = vmatprep.subr.mxu0 0.0
        %530 = vmatpush1.msra.mxu0 0.0
        %531 = vmatprep.subr.mxu0 0.0
        %532 = vmatpush1.msra.mxu0 0.0
        %533 = vmatprep.subr.mxu0 0.0
        %534 = vmatpush1.msra.mxu0 0.0
        %535 = vmatprep.subr.mxu0 0.0
        %536 = vmatpush1.msra.mxu0 0.0
        %537 = vmatprep.subr.mxu0 0.0
        %538 = vmatpush1.msra.mxu0 0.0
        %539 = vmatprep.subr.mxu0 0.0
        %540 = vmatpush1.msra.mxu0 0.0
        %541 = vmatprep.subr.mxu0 0.0
        %542 = vmatpush1.msra.mxu0 0.0
        %543 = vmatprep.subr.mxu0 0.0
        %544 = vmatpush1.msra.mxu0 0.0
        %545 = vmatprep.subr.mxu0 0.0
        %546 = vmatpush1.msra.mxu0 0.0
        %547 = vmatprep.subr.mxu0 0.0
        %548 = vmatpush1.msra.mxu0 0.0
        %549 = vmatprep.subr.mxu0 0.0
        %550 = vmatpush1.msra.mxu0 0.0
        %551 = vmatprep.subr.mxu0 0.0
        %552 = vmatpush1.msra.mxu0 0.0
        %553 = vmatprep.subr.mxu0 0.0
        %554 = vmatpush1.msra.mxu0 0.0
        %555 = vmatprep.subr.mxu0 0.0
        %556 = vmatpush1.msra.mxu0 0.0
        %557 = vmatprep.subr.mxu0 0.0
        %558 = vmatpush1.msra.mxu0 0.0
        %559 = vmatprep.subr.mxu0 0.0
        %560 = vmatpush1.msra.mxu0 0.0
        %561 = vmatprep.subr.mxu0 0.0
        %562 = vmatpush1.msra.mxu0 0.0
        %563 = vmatprep.subr.mxu0 0.0
        %564 = vmatpush1.msra.mxu0 0.0
        %565 = vmatprep.subr.mxu0 0.0
        %566 = vmatpush1.msra.mxu0 0.0
        %567 = vmatprep.subr.mxu0 0.0
        %568 = vmatpush1.msra.mxu0 0.0
        %569 = vmatprep.subr.mxu0 0.0
        %570 = vmatpush1.msra.mxu0 0.0
        %571 = vmatprep.mubr.f32.mxu0 0.0
        %572 = vmatmul.mubr.f32.gmra.mrb[0].mxu0 %v505
        %v573 = vpop.f32.mrb[0].mxu0
        %v574 = vadd.f32 0.0, %v573
        %v575 = vpop.f32.mrb[0].mxu0
        %576 = vdwg.mxu0
        %v577 = vmul.f32 %v428, %v501
        %578 = vadd.xlane.f32.xlu0 %v577
        %v579 = vpop.xlane.xlu0 %578
        %v580 = vmul.f32 %v574, %v428
        %581 = vadd.xlane.f32.xlu0 %v580
        %v582 = vpop.xlane.xlu0 %581
        %v583 = vmin.f32 %v579, 0.0
        %v584 = vand.u32 2147483647, %v579
        %v585 = vsub.f32 0.0, %v584
        %v586 = vmul.f32 %v585, 1.442695
        %v587 = vpow.pop %v586
        %v588 = vadd.f32 %v587, 1.0
        %v589 = vlog2.pop %v588
        %v590 = vmul.f32 %v589, 0.6931472
        %v591 = vmul.f32 -0.5, %v587
        %v592 = vadd.f32 %v591, 1.0
        %v593 = vmul.f32 %v592, %v587
        %v594 = vand.u32 2147483647, %v587
        %vm595 = vcmp.lt.f32.partialorder %v594, 0.0004427343
        %v596 = vsel %vm595, %v593, %v590
        %v597 = vsub.f32 %v583, %v596
        %v598 = vsub.f32 0.0, %v582
        %v599 = vmin.f32 %v598, 0.0
        %v600 = vand.u32 2147483647, %v598
        %v601 = vsub.f32 0.0, %v600
        %v602 = vmul.f32 %v601, 1.442695
        %v603 = vpow.pop %v602
        %v604 = vadd.f32 %v603, 1.0
        %v605 = vlog2.pop %v604
        %v606 = vmul.f32 %v605, 0.6931472
        %v607 = vmul.f32 -0.5, %v603
        %v608 = vadd.f32 %v607, 1.0
        %v609 = vmul.f32 %v608, %v603
        %v610 = vand.u32 2147483647, %v603
        %vm611 = vcmp.lt.f32.partialorder %v610, 0.0004427343
        %v612 = vsel %vm611, %v609, %v606
        %v613 = vsub.f32 %v599, %v612
        %v614 = vadd.f32 %v597, %v613
        %s615 = smul.u32 %s20, 8
        %v616 = vlaneseq
        %v617 = vshrl.u32 %v616, 7
        %v618 = vstv %s615
        %v619 = vadd.s32 %v618, %v617
        %vm620 = vcmp.lt.s32.totalorder %v619, 16
        %v621 = vsel %vm620, %v614, 0.0
        %vm622 = vcmask 7168
        %v623 = vsel %vm622, %v621, 0.0
        %624 = vadd.xlane.f32.xlu0 %v623
        %v625 = vpop.xlane.xlu0 %624
        %v626 = vrot.slane %v625, 4
        %v627 = vadd.f32 %v625, %v626
        %v628 = vrot.slane %v627, 2
        %v629 = vadd.f32 %v627, %v628
        %v630 = vrot.slane %v629, 1
        %v631 = vadd.f32 %v629, %v630
        %s632 = vtos %v631
        %vm633 = vcmp.eq.s32.totalorder %v617, 0
        %vm634 = vcmp.eq.s32.totalorder %v273, 0
        %vm635 = vmand %vm633, %vm634
        %v636 = vstv %s632
        %v637 = vsel %vm635, %v636, 0.0
        %638 = vst [vmem:[%s256] sm:$0xff] %v637
        %s639 = sand.u32 %s148, 1
        %s640 = scalar_lea.sflag [#allocation4], %s639
        %s641 = sand.u32 %s148, 1
        %s642 = smul.addr %s641, 8
        %s643 = scalar_lea.vmem [#allocation5], %s642
        // Predicated region
        $region45: #{tpu_custom_call.1} parent=39 // pred_check
          %p644 = pneg %p158
        $region46: #{tpu_custom_call.1} parent=39 // pred_check_branch
          %646 = sbr.rel (%p644) target = $region48
        $region47: #{tpu_custom_call.1} parent=39 // pred_region
          %s648 = ssub.s32 128, 128
          %649 = vsyncadd %s640, %s648
          %s650 = smul.addr %s20, 128
          %s651 = scalar_lea.hbm %s5, %s650
          %s653 = sshll.u32 %s643, 4
          %s654 = int_to_ptr.vmem [resolvable:$true] %s653
          %656 = dma.vmem_to_hbm [thread:$0]  %s654, 128, %s651, %s640
        $region48: #{tpu_custom_call.1} parent=39 // pred_fallthru
          _
      $region40: #{tpu_custom_call.1} parent=5 // pred_fallthru
        _
      %p657 = scmp.le.s32.totalorder 2, %s15
      // Predicated region
      $region49: #{tpu_custom_call.1} parent=5 // pred_check
        %p658 = pneg %p657
      $region50: #{tpu_custom_call.1} parent=5 // pred_check_branch
        %660 = sbr.rel (%p658) target = $region52
      $region51: #{tpu_custom_call.1} parent=5 // pred_region
        %s661 = ssub.s32 %s15, 2
        // Predicated region
        $region53: #{tpu_custom_call.1} parent=51 // pred_check
          %p662 = pneg %p164
        $region54: #{tpu_custom_call.1} parent=51 // pred_check_branch
          %664 = sbr.rel (%p662) target = $region56
        $region55: #{tpu_custom_call.1} parent=51 // pred_region
          %s665 = sand.u32 %s149, 1
          %s666 = scalar_lea.sflag [#allocation4], %s665
          %s667 = sand.u32 %s149, 1
          %s668 = smul.addr %s667, 8
          %s669 = scalar_lea.vmem [#allocation5], %s668
          %670 = dma.done %s666, 128
        $region56: #{tpu_custom_call.1} parent=51 // pred_fallthru
          _
      $region52: #{tpu_custom_call.1} parent=5 // pred_fallthru
        _
    $region6: #{tpu_custom_call.1} parent=1 // loop_footer
      %s19 = sadd.s32 1, %s15
    $region7: #{tpu_custom_call.1} parent=1 // loop_footer_branch
      %14 = sbr.rel target = $region3
    $region8: #{tpu_custom_call.1} parent=1 // loop_exit
      _
    %671 = vsyncpa [#allocation3], 1
    %s672 = scalar_lea.sflag [#allocation3], 1
    %673 = vsyncpa %s672, 1
    %674 = vsyncpa [#allocation4], 1
    %s675 = scalar_lea.sflag [#allocation4], 1
    %676 = vsyncpa %s675, 1

</llo_original>
